<compile_context>
chip_gen: v5e
topology: v5e:2x2
jax: 0.10.0
libtpu: 0.0.40
codegen_flags: <defaults>
</compile_context>

<pallas_src>
import functools
import math

import jax
import jax.numpy as jnp
from jax import lax
from jax.experimental import pallas as pl
from jax.experimental.pallas import tpu as pltpu


def _pick_tile(n, candidates):
    for c in candidates:
        if n >= c and n % c == 0:
            return c
    return n  # fall back to the full dimension (always legal)


# ----------------------------- fused QKV projection ---------------------------

def _qkv_proj_kernel(x_ref, w_ref, b_ref, q_ref, k_ref, v_ref, *, nq, nkv):
    y = jnp.dot(x_ref[...], w_ref[...], preferred_element_type=jnp.float32)
    y = y + b_ref[...]
    q_ref[...] = y[:, :nq]
    k_ref[...] = y[:, nq:nq + nkv]
    v_ref[...] = y[:, nq + nkv:]


def pallas_fused_qkv(x2d, w_qkv, b_qkv, nq, nkv):
    """x2d: (M, K); w_qkv: (K, nq+2*nkv); b_qkv: (nq+2*nkv,) -> q, k, v."""
    M, K = x2d.shape
    N = w_qkv.shape[1]
    tile_m = _pick_tile(M, (512, 256, 128, 64, 32, 16, 8))
    grid_m = M // tile_m
    # TODO(synk): for very large d_model add a K grid axis + f32 accumulator
    # (weights are kept fully resident here, which is fine for this module).
    kernel = functools.partial(_qkv_proj_kernel, nq=nq, nkv=nkv)
    return pl.pallas_call(
        kernel,
        out_shape=(
            jax.ShapeDtypeStruct((M, nq), jnp.float32),
            jax.ShapeDtypeStruct((M, nkv), jnp.float32),
            jax.ShapeDtypeStruct((M, nkv), jnp.float32),
        ),
        grid_spec=pltpu.PrefetchScalarGridSpec(
            num_scalar_prefetch=0,
            grid=(grid_m,),
            in_specs=[
                pl.BlockSpec((tile_m, K), lambda i: (i, 0)),
                pl.BlockSpec((K, N), lambda i: (0, 0)),      # weights resident
                pl.BlockSpec((1, N), lambda i: (0, 0)),
            ],
            out_specs=(
                pl.BlockSpec((tile_m, nq), lambda i: (i, 0)),
                pl.BlockSpec((tile_m, nkv), lambda i: (i, 0)),
                pl.BlockSpec((tile_m, nkv), lambda i: (i, 0)),
            ),
        ),
        compiler_params=pltpu.CompilerParams(
            dimension_semantics=("parallel",),
            vmem_limit_bytes=48 * 1024 * 1024),
    )(x2d, w_qkv, b_qkv.reshape(1, N))


# ------------------------- flash RoPE causal attention ------------------------

def _flash_rope_attn_kernel(q_ref, k_ref, v_ref, cq_ref, sq_ref, ck_ref, sk_ref,
                            o_ref, m_sc, l_sc, acc_sc, *,
                            num_q_heads, num_kv_heads, num_q_per_kv, head_dim,
                            tile_s, tile_kv):
    qi = pl.program_id(1)
    ki = pl.program_id(2)
    n_kv = pl.num_programs(2)
    D = head_dim
    half = D // 2

    q_start = qi * tile_s
    kv_start = ki * tile_kv
    q_last = q_start + (tile_s - 1)
    kv_last = kv_start + (tile_kv - 1)

    @pl.when(ki == 0)
    def _init():
        m_sc[...] = jnp.full(m_sc.shape, -jnp.inf, dtype=jnp.float32)
        l_sc[...] = jnp.zeros(l_sc.shape, dtype=jnp.float32)
        acc_sc[...] = jnp.zeros(acc_sc.shape, dtype=jnp.float32)

    def _rope(x, cos, sin_rot):
        # negation of the first half is folded into sin_rot (host side)
        rotated = jnp.concatenate([x[:, half:], x[:, :half]], axis=-1)
        return x * cos + rotated * sin_rot

    def _update(apply_mask):
        q_all = q_ref[0]              # (tile_s, Hq*D)
        k_all = k_ref[0]              # (tile_kv, Hkv*D)
        v_all = v_ref[0]              # (tile_kv, Hkv*D)
        cos_q = cq_ref[...]           # (tile_s, D)  (1/sqrt(D) folded in)
        sin_q = sq_ref[...]
        cos_k = ck_ref[...]           # (tile_kv, D)
        sin_k = sk_ref[...]

        if apply_mask:  # only diagonal blocks build the mask (hoisted out of head loop)
            row = q_start + lax.broadcasted_iota(jnp.int32, (tile_s, tile_kv), 0)
            col = kv_start + lax.broadcasted_iota(jnp.int32, (tile_s, tile_kv), 1)
            keep = row >= col

        # RoPE on K once per KV head; shared across its GQA group of Q heads.
        kr = [_rope(k_all[:, h * D:(h + 1) * D], cos_k, sin_k)
              for h in range(num_kv_heads)]

        for h in range(num_q_heads):
            hk = h // num_q_per_kv
            qr = _rope(q_all[:, h * D:(h + 1) * D], cos_q, sin_q)
            # NT matmul: contract head_dim of both operands, no kr transpose.
            s = lax.dot_general(qr, kr[hk], (((1,), (1,)), ((), ())),
                                preferred_element_type=jnp.float32)
            if apply_mask:
                s = jnp.where(keep, s, -jnp.inf)
            m_prev = m_sc[h]                                    # (tile_s, 1)
            m_new = jnp.maximum(m_prev, jnp.max(s, axis=-1, keepdims=True))
            alpha = jnp.exp(m_prev - m_new)
            p = jnp.exp(s - m_new)
            l_sc[h] = alpha * l_sc[h] + jnp.sum(p, axis=-1, keepdims=True)
            pv = lax.dot_general(p, v_all[:, hk * D:(hk + 1) * D],
                                 (((1,), (0,)), ((), ())),
                                 preferred_element_type=jnp.float32)
            acc_sc[:, h * D:(h + 1) * D] = (
                alpha * acc_sc[:, h * D:(h + 1) * D] + pv)
            m_sc[h] = m_new

    # Causal block classification: fully-masked blocks (kv_start > q_last) do
    # no compute at all; fully-visible blocks skip the mask; only diagonal
    # (straddling) blocks build and apply the iota mask.
    @pl.when(kv_last <= q_start)
    def _full_block():
        _update(apply_mask=False)

    @pl.when(jnp.logical_and(kv_start <= q_last, kv_last > q_start))
    def _diag_block():
        _update(apply_mask=True)

    @pl.when(ki == n_kv - 1)
    def _finalize():
        parts = []
        for h in range(num_q_heads):
            inv = pl.reciprocal(l_sc[h], approx=True)   # EUP, off the VALU path
            parts.append(acc_sc[:, h * D:(h + 1) * D] * inv)
        o_ref[0] = jnp.concatenate(parts, axis=-1).astype(o_ref.dtype)


def pallas_flash_rope_attention(q, k, v, cos_q, sin_q, cos_k, sin_k, *,
                                num_q_heads, num_kv_heads, head_dim):
    """q: (B,S,Hq*D), k/v: (B,S,Hkv*D), cos/sin: (S,D) -> (B,S,Hq*D)."""
    B, S, NQ = q.shape
    NKV = k.shape[-1]
    D = head_dim
    num_q_per_kv = num_q_heads // num_kv_heads

    # Tile sizes chosen so live VMEM (with double buffering) stays well under
    # v7x's 64 MiB budget while staying MXU-friendly on v5e/v6e.
    tile_s = _pick_tile(S, (128, 64, 32, 16, 8))
    tile_kv = _pick_tile(S, (256, 128, 64, 32, 16, 8))
    n_q_tiles = S // tile_s
    n_kv_tiles = S // tile_kv

    def q_map(b, qi, ki):
        return (b, qi, 0)

    def _clamped_kv(qi, ki):
        # Last KV block this q-tile actually needs (causal). Skipped steps
        # re-map to an already-fetched block so their DMA is elided.
        last_needed = (qi * tile_s + (tile_s - 1)) // tile_kv
        return jnp.minimum(ki, last_needed)

    def kv_map(b, qi, ki):
        return (b, _clamped_kv(qi, ki), 0)

    def rope_q_map(b, qi, ki):
        return (qi, 0)

    def rope_k_map(b, qi, ki):
        return (_clamped_kv(qi, ki), 0)

    kernel = functools.partial(
        _flash_rope_attn_kernel,
        num_q_heads=num_q_heads, num_kv_heads=num_kv_heads,
        num_q_per_kv=num_q_per_kv, head_dim=D,
        tile_s=tile_s, tile_kv=tile_kv)

    return pl.pallas_call(
        kernel,
        out_shape=jax.ShapeDtypeStruct((B, S, NQ), jnp.float32),
        grid_spec=pltpu.PrefetchScalarGridSpec(
            num_scalar_prefetch=0,
            grid=(B, n_q_tiles, n_kv_tiles),
            in_specs=[
                pl.BlockSpec((1, tile_s, NQ), q_map),
                pl.BlockSpec((1, tile_kv, NKV), kv_map),
                pl.BlockSpec((1, tile_kv, NKV), kv_map),
                pl.BlockSpec((tile_s, D), rope_q_map),
                pl.BlockSpec((tile_s, D), rope_q_map),
                pl.BlockSpec((tile_kv, D), rope_k_map),
                pl.BlockSpec((tile_kv, D), rope_k_map),
            ],
            out_specs=pl.BlockSpec((1, tile_s, NQ), q_map),
            scratch_shapes=[
                pltpu.VMEM((num_q_heads, tile_s, 1), jnp.float32),  # m
                pltpu.VMEM((num_q_heads, tile_s, 1), jnp.float32),  # l
                pltpu.VMEM((tile_s, NQ), jnp.float32),              # acc
            ]),
        compiler_params=pltpu.CompilerParams(
            dimension_semantics=("parallel", "parallel", "arbitrary"),
            vmem_limit_bytes=48 * 1024 * 1024),
    )(q, k, v, cos_q, sin_q, cos_k, sin_k)


# ---------------------------------- module ------------------------------------

class RoPEMultiHeadAttentionPallas:
    def __init__(self, seq_len, d_model, head_dim, num_q_heads, num_kv_heads,
                 dropout, key):
        assert head_dim == d_model // num_q_heads
        assert num_q_heads % num_kv_heads == 0
        self.seq_len = seq_len
        self.d_model = d_model
        self.head_dim = head_dim
        self.num_q_heads = num_q_heads
        self.num_kv_heads = num_kv_heads
        self.num_q_per_kv = num_q_heads // num_kv_heads
        self.dropout = dropout

        # parameters (stored pre-transposed as (in_features, out_features))
        kq, kk, kv_, bq, bk, bv = jax.random.split(key, 6)
        bound = 1.0 / math.sqrt(d_model)

        def u(k, shape):
            return jax.random.uniform(k, shape, jnp.float32, -bound, bound)

        self.wq = u(kq, (d_model, head_dim * num_q_heads))
        self.wk = u(kk, (d_model, head_dim * num_kv_heads))
        self.wv = u(kv_, (d_model, head_dim * num_kv_heads))
        self.bq = u(bq, (head_dim * num_q_heads,))
        self.bk = u(bk, (head_dim * num_kv_heads,))
        self.bv = u(bv, (head_dim * num_kv_heads,))

        # fused QKV weight/bias: one matmul reads the activations once
        self.w_qkv = jnp.concatenate([self.wq, self.wk, self.wv], axis=1)
        self.b_qkv = jnp.concatenate([self.bq, self.bk, self.bv], axis=0)

        # RoPE caches — repeat_interleave convention, matching the torch module.
        inv_freq = 1.0 / (10000.0 ** (jnp.arange(0, head_dim, 2,
                                                 dtype=jnp.float32) / head_dim))
        t = jnp.arange(seq_len, dtype=jnp.float32)
        freqs = jnp.einsum("i,j->ij", t, inv_freq)   # (S, D/2)
        emb = jnp.repeat(freqs, 2, axis=-1)          # (S, D) interleaved
        self.cos = jnp.cos(emb)
        self.sin = jnp.sin(emb)

        half = head_dim // 2
        # rotate_half's negation folded into the sin cache
        sin_rot = jnp.concatenate([-self.sin[:, :half], self.sin[:, half:]],
                                  axis=-1)
        scale = 1.0 / math.sqrt(float(head_dim))
        # 1/sqrt(D) score scale folded into the Q-side RoPE cache
        self.cos_q = self.cos * scale
        self.sin_rot_q = sin_rot * scale
        self.cos_k = self.cos
        self.sin_rot_k = sin_rot

    def __call__(self, x):
        B, S, Dm = x.shape
        nq = self.num_q_heads * self.head_dim
        nkv = self.num_kv_heads * self.head_dim

        x2 = x.reshape(B * S, Dm)
        q2, k2, v2 = pallas_fused_qkv(x2, self.w_qkv, self.b_qkv, nq, nkv)
        q = q2.reshape(B, S, nq)     # metadata-only reshapes; no transposes
        k = k2.reshape(B, S, nkv)
        v = v2.reshape(B, S, nkv)

        # TODO(synk): attention-weight dropout omitted (eval-mode / p=0 semantics).
        return pallas_flash_rope_attention(
            q, k, v,
            self.cos_q[:S], self.sin_rot_q[:S],
            self.cos_k[:S], self.sin_rot_k[:S],
            num_q_heads=self.num_q_heads,
            num_kv_heads=self.num_kv_heads,
            head_dim=self.head_dim)


# ------------------------------ pure-JAX reference ----------------------------

def reference_forward(mod, x):
    B, S, Dm = x.shape
    D = mod.head_dim

    def rotate_half(t):
        t1, t2 = t[..., : D // 2], t[..., D // 2:]
        return jnp.concatenate([-t2, t1], axis=-1)

    q = x @ mod.wq + mod.bq
    k = x @ mod.wk + mod.bk
    v = x @ mod.wv + mod.bv
    q = q.reshape(B, S, mod.num_q_heads, D).transpose(0, 2, 1, 3)
    k = k.reshape(B, S, mod.num_kv_heads, D).transpose(0, 2, 1, 3)
    v = v.reshape(B, S, mod.num_kv_heads, D).transpose(0, 2, 1, 3)
    if mod.num_q_heads != mod.num_kv_heads:
        k = jnp.repeat(k, mod.num_q_per_kv, axis=1)
        v = jnp.repeat(v, mod.num_q_per_kv, axis=1)
    cos = mod.cos[:S][None, None]
    sin = mod.sin[:S][None, None]
    qr = q * cos + rotate_half(q) * sin
    kr = k * cos + rotate_half(k) * sin
    s = (qr @ kr.transpose(0, 1, 3, 2)) / math.sqrt(float(D))
    mask = jnp.tril(jnp.ones((S, S), dtype=bool))[None, None]
    s = jnp.where(mask, s, -jnp.inf)
    w = jax.nn.softmax(s, axis=-1)
    o = w @ v
    return o.transpose(0, 2, 1, 3).reshape(B, S, mod.num_q_heads * D)


# ----------------------------------- main --------------------------------------

if __name__ == "__main__":
    B, S, Dm = 2, 8, 32
    Hq, Hkv, D = 4, 2, 8          # head_dim = d_model // num_q_heads

    key = jax.random.PRNGKey(0)
    pkey, xkey = jax.random.split(key)

    mod = RoPEMultiHeadAttentionPallas(
        seq_len=S, d_model=Dm, head_dim=D,
        num_q_heads=Hq, num_kv_heads=Hkv, dropout=0.0, key=pkey)

    x = jax.random.normal(xkey, (B, S, Dm), dtype=jnp.float32)

    out = jax.block_until_ready(mod(x))

    ref = reference_forward(mod, x)
    assert out.shape == (B, S, Dm)
    # Tolerance covers the EUP approximate reciprocal used for softmax normalization.
    assert jnp.allclose(out, ref, atol=5e-3, rtol=5e-3), "mismatch vs reference"

    print("KERNEL_OK")
</pallas_src>

<mosaic_0001>
module attributes {stable_mosaic.version = 11 : i64} {
  func.func @_qkv_proj_kernel(%arg0: i32, %arg1: memref<16x32xf32, #tpu.memory_space<vmem>>, %arg2: memref<32x64xf32, #tpu.memory_space<vmem>>, %arg3: memref<1x64xf32, #tpu.memory_space<vmem>>, %arg4: memref<16x32xf32, #tpu.memory_space<vmem>>, %arg5: memref<16x16xf32, #tpu.memory_space<vmem>>, %arg6: memref<16x16xf32, #tpu.memory_space<vmem>>) attributes {dimension_semantics = [#tpu.dimension_semantics<parallel>], iteration_bounds = array<i64: 1>, scalar_prefetch = 0 : i64, scratch_operands = 0 : i64, tpu.core_type = #tpu.core_type<tc>, window_params = [{transform_indices = @transform_0, window_bounds = array<i64: 16, 32>}, {pipeline_mode = #tpu.pipeline_mode<synchronous>, transform_indices = @transform_1, window_bounds = array<i64: 32, 64>}, {pipeline_mode = #tpu.pipeline_mode<synchronous>, transform_indices = @transform_2, window_bounds = array<i64: 1, 64>}, {transform_indices = @transform_3, window_bounds = array<i64: 16, 32>}, {transform_indices = @transform_4, window_bounds = array<i64: 16, 16>}, {transform_indices = @transform_5, window_bounds = array<i64: 16, 16>}]} {
    %c0 = arith.constant 0 : index
    %c0_0 = arith.constant 0 : index
    %0 = vector.load %arg1[%c0, %c0_0] : memref<16x32xf32, #tpu.memory_space<vmem>>, vector<16x32xf32>
    %c0_1 = arith.constant 0 : index
    %c0_2 = arith.constant 0 : index
    %1 = vector.load %arg2[%c0_1, %c0_2] : memref<32x64xf32, #tpu.memory_space<vmem>>, vector<32x64xf32>
    %cst = arith.constant dense<0.000000e+00> : vector<16x64xf32>
    %2 = tpu.matmul %0, %1, %cst {dimension_numbers = #tpu.dot_dimension_numbers<[1], [0], [0], [1], [0, 0, 1, 1], [], []>} : vector<16x32xf32>, vector<32x64xf32>, vector<16x64xf32> -> vector<16x64xf32>
    %c0_3 = arith.constant 0 : index
    %c0_4 = arith.constant 0 : index
    %3 = vector.load %arg3[%c0_3, %c0_4] : memref<1x64xf32, #tpu.memory_space<vmem>>, vector<1x64xf32>
    %4 = vector.broadcast %3 : vector<1x64xf32> to vector<16x64xf32>
    %5 = arith.addf %2, %4 : vector<16x64xf32>
    %6 = vector.extract_strided_slice %5 {offsets = [0, 0], sizes = [16, 32], strides = [1, 1]} : vector<16x64xf32> to vector<16x32xf32>
    %c0_5 = arith.constant 0 : index
    %c0_6 = arith.constant 0 : index
    %7 = vector.load %arg4[%c0_5, %c0_6] : memref<16x32xf32, #tpu.memory_space<vmem>>, vector<16x32xf32>
    tpu.vector_store %arg4[%c0_5, %c0_6], %6 {strides = array<i32>} : memref<16x32xf32, #tpu.memory_space<vmem>>, vector<16x32xf32>,
    %8 = vector.extract_strided_slice %5 {offsets = [0, 32], sizes = [16, 16], strides = [1, 1]} : vector<16x64xf32> to vector<16x16xf32>
    %c0_7 = arith.constant 0 : index
    %c0_8 = arith.constant 0 : index
    %9 = vector.load %arg5[%c0_7, %c0_8] : memref<16x16xf32, #tpu.memory_space<vmem>>, vector<16x16xf32>
    tpu.vector_store %arg5[%c0_7, %c0_8], %8 {strides = array<i32>} : memref<16x16xf32, #tpu.memory_space<vmem>>, vector<16x16xf32>,
    %10 = vector.extract_strided_slice %5 {offsets = [0, 48], sizes = [16, 16], strides = [1, 1]} : vector<16x64xf32> to vector<16x16xf32>
    %c0_9 = arith.constant 0 : index
    %c0_10 = arith.constant 0 : index
    %11 = vector.load %arg6[%c0_9, %c0_10] : memref<16x16xf32, #tpu.memory_space<vmem>>, vector<16x16xf32>
    tpu.vector_store %arg6[%c0_9, %c0_10], %10 {strides = array<i32>} : memref<16x16xf32, #tpu.memory_space<vmem>>, vector<16x16xf32>,
    return
  }
  func.func @transform_0(%arg0: i32) -> (i32, i32) {
    %c0_i32 = arith.constant 0 : i32
    %c0_i32_0 = arith.constant 0 : i32
    return %arg0, %c0_i32 : i32, i32
  }
  func.func @transform_1(%arg0: i32) -> (i32, i32) {
    %c0_i32 = arith.constant 0 : i32
    %c0_i32_0 = arith.constant 0 : i32
    %c0_i32_1 = arith.constant 0 : i32
    return %c0_i32, %c0_i32_0 : i32, i32
  }
  func.func @transform_2(%arg0: i32) -> (i32, i32) {
    %c0_i32 = arith.constant 0 : i32
    %c0_i32_0 = arith.constant 0 : i32
    %c0_i32_1 = arith.constant 0 : i32
    return %c0_i32, %c0_i32_0 : i32, i32
  }
  func.func @transform_3(%arg0: i32) -> (i32, i32) {
    %c0_i32 = arith.constant 0 : i32
    %c0_i32_0 = arith.constant 0 : i32
    return %arg0, %c0_i32 : i32, i32
  }
  func.func @transform_4(%arg0: i32) -> (i32, i32) {
    %c0_i32 = arith.constant 0 : i32
    %c0_i32_0 = arith.constant 0 : i32
    return %arg0, %c0_i32 : i32, i32
  }
  func.func @transform_5(%arg0: i32) -> (i32, i32) {
    %c0_i32 = arith.constant 0 : i32
    %c0_i32_0 = arith.constant 0 : i32
    return %arg0, %c0_i32 : i32, i32
  }
}

</mosaic_0001>

<llo_original>
// kernel: tpu_custom_call.1
$region0: #{tpu_custom_call.1}
  #allocation0 [shape = 'u32[]', space=smem, size = 0x4, offset = 0x4, fixed_abs, tag = 'smem constant byte address 0x4 - core index']
  #allocation1 [shape = 'u32[72,128]{1,0:T(1,128)}', space=vmem, size = 0x9000, scoped, tag = 'internal scratch']
  %s0 = inlined_call_operand.hbm [shape: f32[16,32], index: 0, kind: input, shape index: {}]
  %s1 = inlined_call_operand.hbm [shape: f32[32,64], index: 1, kind: input, shape index: {}]
  %s2 = inlined_call_operand.vmem [shape: f32[1,64], index: 2, kind: input, shape index: {}]
  %s3 = inlined_call_operand.hbm [shape: f32[16,32], index: 3, kind: output, shape index: {0}]
  %s4 = inlined_call_operand.hbm [shape: f32[16,16], index: 4, kind: output, shape index: {1}]
  %s5 = inlined_call_operand.hbm [shape: f32[16,16], index: 5, kind: output, shape index: {2}]
  %6 = xla_tuple %s3, %s4, %s5
  %s7 = sld [smem:[#allocation0]]
  $region46: #{tpu_custom_call.1} parent=0
    _
  %s9 = ssub.s32 1, %s7
  %s10 = scalar_select 0, %s9, %s7
  $region1: #{tpu_custom_call.1} parent=0
    #allocation2 [shape = 'u8[8192]{0}', space=vmem, size = 0x2000, scoped, tag = 'input window, operand 0, single buffered']
    #allocation3 [shape = 's32[1]{0}', space=sflag, size = 0x4, scoped, tag = 'scoped memory for tpu_custom_call.1']
    #allocation4 [shape = 's32[1]{0}', space=sflag, size = 0x4, scoped, tag = 'scoped memory for tpu_custom_call.1']
    #allocation5 [shape = 'u8[16384]{0}', space=vmem, size = 0x4000, scoped, tag = 'input window, operand 1, single buffered']
    #allocation6 [shape = 's32[1]{0}', space=sflag, size = 0x4, scoped, tag = 'scoped memory for tpu_custom_call.1']
    #allocation7 [shape = 'u8[8192]{0}', space=vmem, size = 0x2000, scoped, tag = 'output window, operand 0, single buffered']
    #allocation8 [shape = 'u8[8192]{0}', space=vmem, size = 0x2000, scoped, tag = 'output window, operand 1, single buffered']
    #allocation9 [shape = 's32[1]{0}', space=sflag, size = 0x4, scoped, tag = 'scoped memory for tpu_custom_call.1']
    #allocation10 [shape = 'u8[8192]{0}', space=vmem, size = 0x2000, scoped, tag = 'output window, operand 2, single buffered']
    %11 = vsyncpa [#allocation3], 0
    %12 = vsyncpa [#allocation6], 0
    %13 = vsyncpa [#allocation4], 0
    %14 = vsyncpa [#allocation9], 0
    // Predicated region
    $region2: #{tpu_custom_call.1} parent=1 // pred_check
      _
    $region3: #{tpu_custom_call.1} parent=1 // pred_check_branch
      %16 = sbr.rel (0) target = $region5
    $region4: #{tpu_custom_call.1} parent=1 // pred_region
      %18 = vsyncadd [#allocation3], 0
      %s19 = sshll.u32 %s0, 4
      %s20 = int_to_ptr.hbm [resolvable:$true] %s19
      %s21 = sshll.u32 [#allocation2], 4
      %s22 = int_to_ptr.vmem [resolvable:$true] %s21
      %27 = dma.hbm_to_vmem [thread:$0]  %s20, 256, %s22, [#allocation3], 128, 128, 8
    $region5: #{tpu_custom_call.1} parent=1 // pred_fallthru
      _
    // Predicated region
    $region6: #{tpu_custom_call.1} parent=1 // pred_check
      _
    $region7: #{tpu_custom_call.1} parent=1 // pred_check_branch
      %29 = sbr.rel (0) target = $region9
    $region8: #{tpu_custom_call.1} parent=1 // pred_region
      %31 = vsyncadd [#allocation6], 0
      %s32 = sshll.u32 %s1, 4
      %s33 = int_to_ptr.hbm [resolvable:$true] %s32
      %s34 = sshll.u32 [#allocation5], 4
      %s35 = int_to_ptr.vmem [resolvable:$true] %s34
      %40 = dma.hbm_to_vmem [thread:$0]  %s33, 512, %s35, [#allocation6], 128, 128, 8
    $region9: #{tpu_custom_call.1} parent=1 // pred_fallthru
      _
    // Predicated region
    $region10: #{tpu_custom_call.1} parent=1 // pred_check
      _
    $region11: #{tpu_custom_call.1} parent=1 // pred_check_branch
      %42 = sbr.rel (0) target = $region13
    $region12: #{tpu_custom_call.1} parent=1 // pred_region
      _
    $region13: #{tpu_custom_call.1} parent=1 // pred_fallthru
      _
    // Predicated region
    $region14: #{tpu_custom_call.1} parent=1 // pred_check
      _
    $region15: #{tpu_custom_call.1} parent=1 // pred_check_branch
      %44 = sbr.rel (0) target = $region17
    $region16: #{tpu_custom_call.1} parent=1 // pred_region
      %46 = dma.done [#allocation3], 256
    $region17: #{tpu_custom_call.1} parent=1 // pred_fallthru
      _
    // Predicated region
    $region18: #{tpu_custom_call.1} parent=1 // pred_check
      _
    $region19: #{tpu_custom_call.1} parent=1 // pred_check_branch
      %48 = sbr.rel (0) target = $region21
    $region20: #{tpu_custom_call.1} parent=1 // pred_region
      %50 = dma.done [#allocation6], 512
    $region21: #{tpu_custom_call.1} parent=1 // pred_fallthru
      _
    %v51 = vld [vmem:[#allocation2] sm:$0xff]
    %v52 = vld [vmem:[#allocation2 + $0x8] sm:$0xff]
    %v53 = vld [vmem:[#allocation5] sm:$0xff]
    %v54 = vld [vmem:[#allocation5 + $0x8] sm:$0xff]
    %v55 = vld [vmem:[#allocation5 + $0x10] sm:$0xff]
    %v56 = vld [vmem:[#allocation5 + $0x18] sm:$0xff]
    %v57 = vld [vmem:[%s2] sm:$0x1]
    %v59 = vperm.slane %v57, 0
    %vm61 = vcmask 261120
    %v63 = vsel %vm61, %v51, 0
    %v66 = vsel %vm61, %v52, 0
    %68 = vmatpush.msra.mxu0 0.0
    %69 = vmatpush.msra.mxu0 0.0
    %70 = vmatpush.msra.mxu0 0.0
    %71 = vmatpush.msra.mxu0 0.0
    %72 = vmatpush.msra.mxu0 0.0
    %73 = vmatpush.msra.mxu0 0.0
    %74 = vmatpush.msra.mxu0 0.0
    %75 = vmatpush.msra.mxu0 0.0
    %76 = vmatpush.msra.mxu0 0.0
    %77 = vmatpush.msra.mxu0 0.0
    %78 = vmatpush.msra.mxu0 0.0
    %79 = vmatpush.msra.mxu0 0.0
    %80 = vmatpush.msra.mxu0 %v56
    %81 = vmatpush.msra.mxu0 %v55
    %82 = vmatpush.msra.mxu0 %v54
    %83 = vmatpush.msra.mxu0 %v53
    %84 = vmatmul.f32.gmra.mxu0 %v63
    %v85 = vpop.f32.mrf.mxu0
    %v86 = vadd.f32 %v59, %v85
    %87 = vmatmul.f32.gmra.mxu0 %v66
    %v88 = vpop.f32.mrf.mxu0
    %v89 = vadd.f32 %v59, %v88
    %90 = vdwg.mxu0
    %91 = vst.msk [vmem:[#allocation7] sm:$0xff] %vm61, %v86
    %92 = vst.msk [vmem:[#allocation7 + $0x8] sm:$0xff] %vm61, %v89
    %95 = vrot.lane.b32.xlu0 %v86, 96
    %v96 = vpop.permute.xlu0 %95
    %97 = vrot.lane.b32.xlu0 %v89, 96
    %v98 = vpop.permute.xlu0 %97
    %vm101 = vcmask 130048
    %102 = vst.msk [vmem:[#allocation8] sm:$0xff] %vm101, %v96
    %103 = vst.msk [vmem:[#allocation8 + $0x8] sm:$0xff] %vm101, %v98
    %104 = vrot.lane.b32.xlu0 %v86, 80
    %v105 = vpop.permute.xlu0 %104
    %106 = vrot.lane.b32.xlu0 %v89, 80
    %v107 = vpop.permute.xlu0 %106
    %110 = vst.msk [vmem:[#allocation10] sm:$0xff] %vm101, %v105
    %111 = vst.msk [vmem:[#allocation10 + $0x8] sm:$0xff] %vm101, %v107
    // Predicated region
    $region22: #{tpu_custom_call.1} parent=1 // pred_check
      _
    $region23: #{tpu_custom_call.1} parent=1 // pred_check_branch
      %113 = sbr.rel (0) target = $region25
    $region24: #{tpu_custom_call.1} parent=1 // pred_region
      %115 = vsyncadd [#allocation4], 0
      %s116 = sshll.u32 [#allocation7], 4
      %s117 = int_to_ptr.vmem [resolvable:$true] %s116
      %s118 = sshll.u32 %s3, 4
      %s119 = int_to_ptr.hbm [resolvable:$true] %s118
      %124 = dma.vmem_to_hbm [thread:$0]  %s117, 256, %s119, [#allocation4], 128, 128, 8
    $region25: #{tpu_custom_call.1} parent=1 // pred_fallthru
      _
    // Predicated region
    $region26: #{tpu_custom_call.1} parent=1 // pred_check
      _
    $region27: #{tpu_custom_call.1} parent=1 // pred_check_branch
      %126 = sbr.rel (0) target = $region29
    $region28: #{tpu_custom_call.1} parent=1 // pred_region
      %128 = vsyncadd [#allocation9], 0
      %s129 = sshll.u32 [#allocation8], 4
      %s130 = int_to_ptr.vmem [resolvable:$true] %s129
      %s131 = sshll.u32 %s4, 4
      %s132 = int_to_ptr.hbm [resolvable:$true] %s131
      %137 = dma.vmem_to_hbm [thread:$0]  %s130, 256, %s132, [#allocation9], 128, 128, 8
    $region29: #{tpu_custom_call.1} parent=1 // pred_fallthru
      _
    // Predicated region
    $region30: #{tpu_custom_call.1} parent=1 // pred_check
      _
    $region31: #{tpu_custom_call.1} parent=1 // pred_check_branch
      %139 = sbr.rel (0) target = $region33
    $region32: #{tpu_custom_call.1} parent=1 // pred_region
      %141 = vsyncadd [#allocation9], 0
      %s142 = sshll.u32 [#allocation10], 4
      %s143 = int_to_ptr.vmem [resolvable:$true] %s142
      %s144 = sshll.u32 %s5, 4
      %s145 = int_to_ptr.hbm [resolvable:$true] %s144
      %150 = dma.vmem_to_hbm [thread:$0]  %s143, 256, %s145, [#allocation9], 128, 128, 8
    $region33: #{tpu_custom_call.1} parent=1 // pred_fallthru
      _
    // Predicated region
    $region34: #{tpu_custom_call.1} parent=1 // pred_check
      _
    $region35: #{tpu_custom_call.1} parent=1 // pred_check_branch
      %152 = sbr.rel (0) target = $region37
    $region36: #{tpu_custom_call.1} parent=1 // pred_region
      %154 = dma.done [#allocation4], 256
    $region37: #{tpu_custom_call.1} parent=1 // pred_fallthru
      _
    // Predicated region
    $region38: #{tpu_custom_call.1} parent=1 // pred_check
      _
    $region39: #{tpu_custom_call.1} parent=1 // pred_check_branch
      %156 = sbr.rel (0) target = $region41
    $region40: #{tpu_custom_call.1} parent=1 // pred_region
      %158 = dma.done [#allocation9], 256
    $region41: #{tpu_custom_call.1} parent=1 // pred_fallthru
      _
    // Predicated region
    $region42: #{tpu_custom_call.1} parent=1 // pred_check
      _
    $region43: #{tpu_custom_call.1} parent=1 // pred_check_branch
      %160 = sbr.rel (0) target = $region45
    $region44: #{tpu_custom_call.1} parent=1 // pred_region
      %162 = dma.done [#allocation9], 256
    $region45: #{tpu_custom_call.1} parent=1 // pred_fallthru
      _
    %163 = vsyncpa [#allocation3], 1
    %164 = vsyncpa [#allocation6], 1
    %165 = vsyncpa [#allocation4], 1
    %166 = vsyncpa [#allocation9], 1

</llo_original>
